<compile_context>
chip_gen: v6e
topology: v6e:2x2x1
jax: 0.10.0
libtpu: 0.0.40
codegen_flags: <defaults>
</compile_context>

<pallas_src>
import functools

import jax
import jax.numpy as jnp
from jax.experimental import pallas as pl
from jax.experimental.pallas import tpu as pltpu


# ----------------------------------------------------------------------------
# Chip introspection (host-side, trace-time only; robust fallbacks).
# ----------------------------------------------------------------------------
def _chip_kind():
    try:
        return jax.devices()[0].device_kind.lower()
    except Exception:
        return ""


def _tensorcores_per_chip():
    # v7x has 2 TensorCores per chip; v5e/v6e have 1.
    kind = _chip_kind()
    return 2 if ("v7" in kind or "7x" in kind) else 1


def _default_compute_dtype():
    # v6e/v7x have bf16 EUP (~2x tanh throughput) and bf16-native MXU paths;
    # v5e has neither, so casting there only adds convert ops -> keep f32.
    kind = _chip_kind()
    if ("v6" in kind) or ("v7" in kind) or ("7x" in kind):
        return jnp.bfloat16
    return jnp.float32


# ----------------------------------------------------------------------------
# Kernel
# ----------------------------------------------------------------------------
def _mlp_kernel(x_ref, w_in_ref, b_in_ref, w_hid_ref, b_hid_ref,
                w_out_ref, b_out_ref, o_ref, *,
                num_hidden_layers, lane_chunk, compute_dtype):
    """Feature-major MLP; batch lives in the lane dimension.

    x_ref:     (2, TB)            w_in_ref:  (NN, 2)     b_in_ref:  (NN, 1)
    w_hid_ref: (NL, NN, NN)       b_hid_ref: (NL, NN, 1)
    w_out_ref: (3, NN)            b_out_ref: (3, 1)      o_ref:     (3, TB)
    """
    nl = num_hidden_layers
    tb = x_ref.shape[1]

    # Hoist the (tiny) weights out of the lane-chunk loop; cast matmul operands
    # once to the compute dtype (bf16 on v6e/v7x, f32 on v5e).
    w_in = w_in_ref[...]                                       # (NN, 2) f32
    b_in = b_in_ref[...]                                       # (NN, 1) f32
    w_hid = [w_hid_ref[li].astype(compute_dtype) for li in range(nl)]
    b_hid = [b_hid_ref[li] for li in range(nl)]                # (NN, 1) f32
    w_out = w_out_ref[...].astype(compute_dtype)               # (3, NN)
    b_out = b_out_ref[...]                                     # (3, 1) f32

    # Process the batch tile in 128/256-lane chunks so the (NN, chunk)
    # activation stays register-resident across the full input->hidden->output
    # chain (NN=32, chunk=256 -> ~8 f32 vregs) instead of spilling to VMEM
    # between layers.
    for c in range(tb // lane_chunk):
        sl = pl.ds(c * lane_chunk, lane_chunk)
        x = x_ref[:, sl]                                       # (2, chunk) f32

        # Input layer, K=2: two VPU broadcast FMAs (skip the MXU entirely).
        pre = (w_in[:, 0:1] * x[0:1, :]                        # (NN,1)*(1,chunk)
               + w_in[:, 1:2] * x[1:2, :]
               + b_in)
        h = jnp.tanh(pre.astype(compute_dtype))                # (NN, chunk)

        # Hidden layers: h <- tanh(W_l @ h + b_l); matmuls accumulate in f32.
        for li in range(nl):
            pre = (jnp.dot(w_hid[li], h, preferred_element_type=jnp.float32)
                   + b_hid[li])
            h = jnp.tanh(pre.astype(compute_dtype))

        # Output layer (no activation); (3, chunk) store is lane-dense.
        out = jnp.dot(w_out, h, preferred_element_type=jnp.float32) + b_out
        o_ref[:, sl] = out.astype(o_ref.dtype)


# ----------------------------------------------------------------------------
# Wrapper
# ----------------------------------------------------------------------------
@functools.partial(jax.jit, static_argnames=("tile_b", "compute_dtype"))
def net_forward(x, params, *, tile_b=1024, compute_dtype=None):
    """MLP forward pass with a Pallas TPU kernel.

    x: (B, 2) float32.
    params: dict with PyTorch-layout weights:
        w_in (NN,2), b_in (NN,1), w_hid (NL,NN,NN), b_hid (NL,NN,1),
        w_out (3,NN), b_out (3,1).
    compute_dtype: None (auto: bf16 on v6e/v7x, f32 on v5e) or an explicit
        dtype (pass jnp.float32 for strict-f32 results everywhere).
    """
    B, in_dim = x.shape
    assert in_dim == 2
    NL, NN, _ = params["w_hid"].shape

    if compute_dtype is None:
        compute_dtype = _default_compute_dtype()

    # --- generation-aware batch-tile / grid selection ------------------------
    # Grid iterations run serially on one TensorCore (~0.35 us each), so on
    # single-TC v5e/v6e we use one big step; on v7x (2 TCs) we split into >= 2
    # "parallel" steps so both cores get a tile.
    b128 = ((B + 127) // 128) * 128
    n_cores = _tensorcores_per_chip()
    tb = min(tile_b, b128)
    if n_cores > 1 and b128 >= n_cores * 128:
        per_core = max(128, (b128 // n_cores // 128) * 128)
        tb = min(tb, per_core)
    tb = max(128, (tb // 128) * 128)

    # Pad batch to a multiple of tb (padded rows are sliced off at the end).
    pad = (-B) % tb
    if pad:
        x = jnp.concatenate([x, jnp.zeros((pad, in_dim), x.dtype)], axis=0)
    Bp = x.shape[0]

    # Feature-major: batch goes to the lane dimension.
    x_t = x.T                                                   # (2, Bp)

    # In-kernel lane chunk (register-resident activations).
    lane_chunk = 256 if tb % 256 == 0 else 128

    kernel = functools.partial(
        _mlp_kernel, num_hidden_layers=NL, lane_chunk=lane_chunk,
        compute_dtype=compute_dtype)

    # Advisory cost for XLA's scheduler around this tiny custom call.
    weight_bytes = sum(int(v.size) * v.dtype.itemsize for v in params.values())
    cost = pl.CostEstimate(
        flops=int(2 * 2 * NN * Bp + 2 * NL * NN * NN * Bp + 2 * 3 * NN * Bp),
        transcendentals=int((NL + 1) * NN * Bp),
        bytes_accessed=int((2 + 3) * Bp * 4 + weight_bytes),
    )

    # NOTE: the whole (NL, NN, NN) weight block is double-buffered; at NN=32
    # this is ~16 KB and irrelevant. If NN/NL are ever scaled up (v7x has only
    # 64 MiB VMEM), single-buffer the constant-index weight specs with
    # pipeline_mode=pl.Buffered(1), cast stored weights to bf16, and/or raise
    # vmem_limit_bytes (or tile w_hid over an extra "arbitrary" grid axis).
    out_t = pl.pallas_call(
        kernel,
        out_shape=jax.ShapeDtypeStruct((3, Bp), jnp.float32),
        grid_spec=pltpu.PrefetchScalarGridSpec(
            num_scalar_prefetch=0,
            grid=(Bp // tb,),
            in_specs=[
                pl.BlockSpec((2, tb), lambda i: (0, i)),          # x (transposed)
                pl.BlockSpec((NN, 2), lambda i: (0, 0)),          # w_in
                pl.BlockSpec((NN, 1), lambda i: (0, 0)),          # b_in
                pl.BlockSpec((NL, NN, NN), lambda i: (0, 0, 0)),  # w_hid
                pl.BlockSpec((NL, NN, 1), lambda i: (0, 0, 0)),   # b_hid
                pl.BlockSpec((3, NN), lambda i: (0, 0)),          # w_out
                pl.BlockSpec((3, 1), lambda i: (0, 0)),           # b_out
            ],
            out_specs=pl.BlockSpec((3, tb), lambda i: (0, i)),    # lane-dense
        ),
        compiler_params=pltpu.CompilerParams(
            dimension_semantics=("parallel",)),
        cost_estimate=cost,
    )(x_t, params["w_in"], params["b_in"], params["w_hid"], params["b_hid"],
      params["w_out"], params["b_out"])

    return out_t.T[:B]                                          # back to (B, 3)


# ----------------------------------------------------------------------------
# Init + reference (pure JAX, PyTorch semantics) for the self-test
# ----------------------------------------------------------------------------
def init_params(key, NL, NN):
    """Deterministic init mimicking nn.Linear's U(-1/sqrt(fan_in), 1/sqrt(fan_in)).

    Weights kept in PyTorch layout (out_features, in_features).
    """
    ks = jax.random.split(key, 6)

    def unif(k, shape, fan_in):
        bound = 1.0 / jnp.sqrt(jnp.float32(fan_in))
        return jax.random.uniform(k, shape, jnp.float32, -bound, bound)

    return {
        "w_in":  unif(ks[0], (NN, 2), 2),
        "b_in":  unif(ks[1], (NN, 1), 2),
        "w_hid": unif(ks[2], (NL, NN, NN), NN),
        "b_hid": unif(ks[3], (NL, NN, 1), NN),
        "w_out": unif(ks[4], (3, NN), NN),
        "b_out": unif(ks[5], (3, 1), NN),
    }


def net_forward_ref(x, params):
    """Pure-JAX reference (batch-major, PyTorch semantics, f32)."""
    h = jnp.tanh(x @ params["w_in"].T + params["b_in"][:, 0])
    for li in range(params["w_hid"].shape[0]):
        h = jnp.tanh(h @ params["w_hid"][li].T + params["b_hid"][li, :, 0])
    return h @ params["w_out"].T + params["b_out"][:, 0]


if __name__ == "__main__":
    NL, NN = 4, 32          # number of hidden layers, hidden width
    B = 256                 # number of (x, y) input points

    key = jax.random.PRNGKey(0)
    k_params, k_x = jax.random.split(key)

    params = init_params(k_params, NL, NN)
    x = jax.random.normal(k_x, (B, 2), jnp.float32)

    out = net_forward(x, params)
    out = jax.block_until_ready(out)

    ref = net_forward_ref(x, params)
    assert out.shape == (B, 3), out.shape

    # bf16 activations (auto-selected on v6e/v7x) drift ~1e-3 relative; the
    # f32 path (v5e / others) stays within 1e-4.
    tol = 1e-4 if _default_compute_dtype() == jnp.float32 else 2e-2
    max_err = float(jnp.max(jnp.abs(out - ref)))
    assert jnp.allclose(out, ref, atol=tol, rtol=tol), max_err

    print("KERNEL_OK")
</pallas_src>

<mosaic_0001>
module attributes {stable_mosaic.version = 11 : i64} {
  func.func @_mlp_kernel(%arg0: i32, %arg1: memref<2x256xf32, #tpu.memory_space<vmem>>, %arg2: memref<32x2xf32, #tpu.memory_space<vmem>>, %arg3: memref<32x1xf32, #tpu.memory_space<vmem>>, %arg4: memref<4x32x32xf32, #tpu.memory_space<vmem>>, %arg5: memref<4x32x1xf32, #tpu.memory_space<vmem>>, %arg6: memref<3x32xf32, #tpu.memory_space<vmem>>, %arg7: memref<3x1xf32, #tpu.memory_space<vmem>>, %arg8: memref<3x256xf32, #tpu.memory_space<vmem>>) attributes {dimension_semantics = [#tpu.dimension_semantics<parallel>], iteration_bounds = array<i64: 1>, scalar_prefetch = 0 : i64, scratch_operands = 0 : i64, tpu.core_type = #tpu.core_type<tc>, window_params = [{transform_indices = @transform_0, window_bounds = array<i64: 2, 256>}, {pipeline_mode = #tpu.pipeline_mode<synchronous>, transform_indices = @transform_1, window_bounds = array<i64: 32, 2>}, {pipeline_mode = #tpu.pipeline_mode<synchronous>, transform_indices = @transform_2, window_bounds = array<i64: 32, 1>}, {pipeline_mode = #tpu.pipeline_mode<synchronous>, transform_indices = @transform_3, window_bounds = array<i64: 4, 32, 32>}, {pipeline_mode = #tpu.pipeline_mode<synchronous>, transform_indices = @transform_4, window_bounds = array<i64: 4, 32, 1>}, {pipeline_mode = #tpu.pipeline_mode<synchronous>, transform_indices = @transform_5, window_bounds = array<i64: 3, 32>}, {pipeline_mode = #tpu.pipeline_mode<synchronous>, transform_indices = @transform_6, window_bounds = array<i64: 3, 1>}, {transform_indices = @transform_7, window_bounds = array<i64: 3, 256>}]} {
    %c0 = arith.constant 0 : index
    %c0_0 = arith.constant 0 : index
    %0 = vector.load %arg2[%c0, %c0_0] : memref<32x2xf32, #tpu.memory_space<vmem>>, vector<32x2xf32>
    %c0_1 = arith.constant 0 : index
    %c0_2 = arith.constant 0 : index
    %1 = vector.load %arg3[%c0_1, %c0_2] : memref<32x1xf32, #tpu.memory_space<vmem>>, vector<32x1xf32>
    %c0_3 = arith.constant 0 : index
    %c0_4 = arith.constant 0 : index
    %c0_5 = arith.constant 0 : index
    %2 = vector.load %arg4[%c0_3, %c0_4, %c0_5] : memref<4x32x32xf32, #tpu.memory_space<vmem>>, vector<1x32x32xf32>
    %3 = vector.shape_cast %2 : vector<1x32x32xf32> to vector<32x32xf32>
    %c1 = arith.constant 1 : index
    %c0_6 = arith.constant 0 : index
    %c0_7 = arith.constant 0 : index
    %4 = vector.load %arg4[%c1, %c0_6, %c0_7] : memref<4x32x32xf32, #tpu.memory_space<vmem>>, vector<1x32x32xf32>
    %5 = vector.shape_cast %4 : vector<1x32x32xf32> to vector<32x32xf32>
    %c2 = arith.constant 2 : index
    %c0_8 = arith.constant 0 : index
    %c0_9 = arith.constant 0 : index
    %6 = vector.load %arg4[%c2, %c0_8, %c0_9] : memref<4x32x32xf32, #tpu.memory_space<vmem>>, vector<1x32x32xf32>
    %7 = vector.shape_cast %6 : vector<1x32x32xf32> to vector<32x32xf32>
    %c3 = arith.constant 3 : index
    %c0_10 = arith.constant 0 : index
    %c0_11 = arith.constant 0 : index
    %8 = vector.load %arg4[%c3, %c0_10, %c0_11] : memref<4x32x32xf32, #tpu.memory_space<vmem>>, vector<1x32x32xf32>
    %9 = vector.shape_cast %8 : vector<1x32x32xf32> to vector<32x32xf32>
    %c0_12 = arith.constant 0 : index
    %c0_13 = arith.constant 0 : index
    %c0_14 = arith.constant 0 : index
    %10 = vector.load %arg5[%c0_12, %c0_13, %c0_14] : memref<4x32x1xf32, #tpu.memory_space<vmem>>, vector<1x32x1xf32>
    %11 = vector.shape_cast %10 : vector<1x32x1xf32> to vector<32x1xf32>
    %c1_15 = arith.constant 1 : index
    %c0_16 = arith.constant 0 : index
    %c0_17 = arith.constant 0 : index
    %12 = vector.load %arg5[%c1_15, %c0_16, %c0_17] : memref<4x32x1xf32, #tpu.memory_space<vmem>>, vector<1x32x1xf32>
    %13 = vector.shape_cast %12 : vector<1x32x1xf32> to vector<32x1xf32>
    %c2_18 = arith.constant 2 : index
    %c0_19 = arith.constant 0 : index
    %c0_20 = arith.constant 0 : index
    %14 = vector.load %arg5[%c2_18, %c0_19, %c0_20] : memref<4x32x1xf32, #tpu.memory_space<vmem>>, vector<1x32x1xf32>
    %15 = vector.shape_cast %14 : vector<1x32x1xf32> to vector<32x1xf32>
    %c3_21 = arith.constant 3 : index
    %c0_22 = arith.constant 0 : index
    %c0_23 = arith.constant 0 : index
    %16 = vector.load %arg5[%c3_21, %c0_22, %c0_23] : memref<4x32x1xf32, #tpu.memory_space<vmem>>, vector<1x32x1xf32>
    %17 = vector.shape_cast %16 : vector<1x32x1xf32> to vector<32x1xf32>
    %c0_24 = arith.constant 0 : index
    %c0_25 = arith.constant 0 : index
    %18 = vector.load %arg6[%c0_24, %c0_25] : memref<3x32xf32, #tpu.memory_space<vmem>>, vector<3x32xf32>
    %c0_26 = arith.constant 0 : index
    %c0_27 = arith.constant 0 : index
    %19 = vector.load %arg7[%c0_26, %c0_27] : memref<3x1xf32, #tpu.memory_space<vmem>>, vector<3x1xf32>
    %c0_28 = arith.constant 0 : index
    %c0_29 = arith.constant 0 : index
    %20 = vector.load %arg1[%c0_28, %c0_29] : memref<2x256xf32, #tpu.memory_space<vmem>>, vector<2x256xf32>
    %21 = vector.extract_strided_slice %0 {offsets = [0, 0], sizes = [32, 1], strides = [1, 1]} : vector<32x2xf32> to vector<32x1xf32>
    %22 = vector.extract_strided_slice %20 {offsets = [0, 0], sizes = [1, 256], strides = [1, 1]} : vector<2x256xf32> to vector<1x256xf32>
    %23 = vector.broadcast %21 : vector<32x1xf32> to vector<32x256xf32>
    %24 = vector.broadcast %22 : vector<1x256xf32> to vector<32x256xf32>
    %25 = arith.mulf %23, %24 : vector<32x256xf32>
    %26 = vector.extract_strided_slice %0 {offsets = [0, 1], sizes = [32, 1], strides = [1, 1]} : vector<32x2xf32> to vector<32x1xf32>
    %27 = vector.extract_strided_slice %20 {offsets = [1, 0], sizes = [1, 256], strides = [1, 1]} : vector<2x256xf32> to vector<1x256xf32>
    %28 = vector.broadcast %26 : vector<32x1xf32> to vector<32x256xf32>
    %29 = vector.broadcast %27 : vector<1x256xf32> to vector<32x256xf32>
    %30 = arith.mulf %28, %29 : vector<32x256xf32>
    %31 = arith.addf %25, %30 : vector<32x256xf32>
    %32 = vector.broadcast %1 : vector<32x1xf32> to vector<32x256xf32>
    %33 = arith.addf %31, %32 : vector<32x256xf32>
    %34 = math.tanh %33 : vector<32x256xf32>
    %cst = arith.constant dense<0.000000e+00> : vector<32x256xf32>
    %35 = tpu.matmul %3, %34, %cst {dimension_numbers = #tpu.dot_dimension_numbers<[1], [0], [0], [1], [0, 0, 1, 1], [], []>} : vector<32x32xf32>, vector<32x256xf32>, vector<32x256xf32> -> vector<32x256xf32>
    %36 = vector.broadcast %11 : vector<32x1xf32> to vector<32x256xf32>
    %37 = arith.addf %35, %36 : vector<32x256xf32>
    %38 = math.tanh %37 : vector<32x256xf32>
    %cst_30 = arith.constant dense<0.000000e+00> : vector<32x256xf32>
    %39 = tpu.matmul %5, %38, %cst_30 {dimension_numbers = #tpu.dot_dimension_numbers<[1], [0], [0], [1], [0, 0, 1, 1], [], []>} : vector<32x32xf32>, vector<32x256xf32>, vector<32x256xf32> -> vector<32x256xf32>
    %40 = vector.broadcast %13 : vector<32x1xf32> to vector<32x256xf32>
    %41 = arith.addf %39, %40 : vector<32x256xf32>
    %42 = math.tanh %41 : vector<32x256xf32>
    %cst_31 = arith.constant dense<0.000000e+00> : vector<32x256xf32>
    %43 = tpu.matmul %7, %42, %cst_31 {dimension_numbers = #tpu.dot_dimension_numbers<[1], [0], [0], [1], [0, 0, 1, 1], [], []>} : vector<32x32xf32>, vector<32x256xf32>, vector<32x256xf32> -> vector<32x256xf32>
    %44 = vector.broadcast %15 : vector<32x1xf32> to vector<32x256xf32>
    %45 = arith.addf %43, %44 : vector<32x256xf32>
    %46 = math.tanh %45 : vector<32x256xf32>
    %cst_32 = arith.constant dense<0.000000e+00> : vector<32x256xf32>
    %47 = tpu.matmul %9, %46, %cst_32 {dimension_numbers = #tpu.dot_dimension_numbers<[1], [0], [0], [1], [0, 0, 1, 1], [], []>} : vector<32x32xf32>, vector<32x256xf32>, vector<32x256xf32> -> vector<32x256xf32>
    %48 = vector.broadcast %17 : vector<32x1xf32> to vector<32x256xf32>
    %49 = arith.addf %47, %48 : vector<32x256xf32>
    %50 = math.tanh %49 : vector<32x256xf32>
    %cst_33 = arith.constant dense<0.000000e+00> : vector<3x256xf32>
    %51 = tpu.matmul %18, %50, %cst_33 {dimension_numbers = #tpu.dot_dimension_numbers<[1], [0], [0], [1], [0, 0, 1, 1], [], []>} : vector<3x32xf32>, vector<32x256xf32>, vector<3x256xf32> -> vector<3x256xf32>
    %52 = vector.broadcast %19 : vector<3x1xf32> to vector<3x256xf32>
    %53 = arith.addf %51, %52 : vector<3x256xf32>
    %c0_34 = arith.constant 0 : index
    %c0_35 = arith.constant 0 : index
    %54 = vector.load %arg8[%c0_34, %c0_35] : memref<3x256xf32, #tpu.memory_space<vmem>>, vector<3x256xf32>
    tpu.vector_store %arg8[%c0_34, %c0_35], %53 {strides = array<i32>} : memref<3x256xf32, #tpu.memory_space<vmem>>, vector<3x256xf32>,
    return
  }
  func.func @transform_0(%arg0: i32) -> (i32, i32) {
    %c0_i32 = arith.constant 0 : i32
    %c0_i32_0 = arith.constant 0 : i32
    return %c0_i32, %arg0 : i32, i32
  }
  func.func @transform_1(%arg0: i32) -> (i32, i32) {
    %c0_i32 = arith.constant 0 : i32
    %c0_i32_0 = arith.constant 0 : i32
    %c0_i32_1 = arith.constant 0 : i32
    return %c0_i32, %c0_i32_0 : i32, i32
  }
  func.func @transform_2(%arg0: i32) -> (i32, i32) {
    %c0_i32 = arith.constant 0 : i32
    %c0_i32_0 = arith.constant 0 : i32
    %c0_i32_1 = arith.constant 0 : i32
    return %c0_i32, %c0_i32_0 : i32, i32
  }
  func.func @transform_3(%arg0: i32) -> (i32, i32, i32) {
    %c0_i32 = arith.constant 0 : i32
    %c0_i32_0 = arith.constant 0 : i32
    %c0_i32_1 = arith.constant 0 : i32
    %c0_i32_2 = arith.constant 0 : i32
    return %c0_i32, %c0_i32_0, %c0_i32_1 : i32, i32, i32
  }
  func.func @transform_4(%arg0: i32) -> (i32, i32, i32) {
    %c0_i32 = arith.constant 0 : i32
    %c0_i32_0 = arith.constant 0 : i32
    %c0_i32_1 = arith.constant 0 : i32
    %c0_i32_2 = arith.constant 0 : i32
    return %c0_i32, %c0_i32_0, %c0_i32_1 : i32, i32, i32
  }
  func.func @transform_5(%arg0: i32) -> (i32, i32) {
    %c0_i32 = arith.constant 0 : i32
    %c0_i32_0 = arith.constant 0 : i32
    %c0_i32_1 = arith.constant 0 : i32
    return %c0_i32, %c0_i32_0 : i32, i32
  }
  func.func @transform_6(%arg0: i32) -> (i32, i32) {
    %c0_i32 = arith.constant 0 : i32
    %c0_i32_0 = arith.constant 0 : i32
    %c0_i32_1 = arith.constant 0 : i32
    return %c0_i32, %c0_i32_0 : i32, i32
  }
  func.func @transform_7(%arg0: i32) -> (i32, i32) {
    %c0_i32 = arith.constant 0 : i32
    %c0_i32_0 = arith.constant 0 : i32
    return %c0_i32, %arg0 : i32, i32
  }
}

</mosaic_0001>

<llo_original>
// kernel: net_forward.1
$region0: #{net_forward.1}
  #allocation0 [shape = 'u32[]', space=smem, size = 0x4, offset = 0x4, fixed_abs, tag = 'smem constant byte address 0x4 - core index']
  #allocation1 [shape = 'u32[144,128]{1,0:T(1,128)}', space=vmem, size = 0x12000, scoped, tag = 'internal scratch']
  %s0 = inlined_call_operand.vmem [shape: f32[2,256], index: 0, kind: input, shape index: {}]
  %s1 = inlined_call_operand.vmem [shape: f32[32,2], index: 1, kind: input, shape index: {}]
  %s2 = inlined_call_operand.vmem [shape: f32[32,1], index: 2, kind: input, shape index: {}]
  %s3 = inlined_call_operand.vmem [shape: f32[4,32,32], index: 3, kind: input, shape index: {}]
  %s4 = inlined_call_operand.vmem [shape: f32[4,32,1], index: 4, kind: input, shape index: {}]
  %s5 = inlined_call_operand.vmem [shape: f32[3,32], index: 5, kind: input, shape index: {}]
  %s6 = inlined_call_operand.vmem [shape: f32[3,1], index: 6, kind: input, shape index: {}]
  %s7 = inlined_call_operand.hbm [shape: f32[3,256], index: 7, kind: output, shape index: {}]
  %s8 = sld [smem:[#allocation0]]
  $region38: #{net_forward.1} parent=0
    _
  %s10 = ssub.s32 1, %s8
  %s11 = scalar_select 0, %s10, %s8
  $region1: #{net_forward.1} parent=0
    #allocation2 [shape = 'u8[4096]{0}', space=vmem, size = 0x1000, scoped, tag = 'output window, operand 0, single buffered']
    #allocation3 [shape = 's32[1]{0}', space=sflag, size = 0x4, scoped, tag = 'scoped memory for net_forward.1']
    %12 = vsyncpa [#allocation3], 0
    // Predicated region
    $region2: #{net_forward.1} parent=1 // pred_check
      _
    $region3: #{net_forward.1} parent=1 // pred_check_branch
      %14 = sbr.rel (0) target = $region5
    $region4: #{net_forward.1} parent=1 // pred_region
      _
    $region5: #{net_forward.1} parent=1 // pred_fallthru
      _
    // Predicated region
    $region6: #{net_forward.1} parent=1 // pred_check
      _
    $region7: #{net_forward.1} parent=1 // pred_check_branch
      %16 = sbr.rel (0) target = $region9
    $region8: #{net_forward.1} parent=1 // pred_region
      _
    $region9: #{net_forward.1} parent=1 // pred_fallthru
      _
    // Predicated region
    $region10: #{net_forward.1} parent=1 // pred_check
      _
    $region11: #{net_forward.1} parent=1 // pred_check_branch
      %18 = sbr.rel (0) target = $region13
    $region12: #{net_forward.1} parent=1 // pred_region
      _
    $region13: #{net_forward.1} parent=1 // pred_fallthru
      _
    // Predicated region
    $region14: #{net_forward.1} parent=1 // pred_check
      _
    $region15: #{net_forward.1} parent=1 // pred_check_branch
      %20 = sbr.rel (0) target = $region17
    $region16: #{net_forward.1} parent=1 // pred_region
      _
    $region17: #{net_forward.1} parent=1 // pred_fallthru
      _
    // Predicated region
    $region18: #{net_forward.1} parent=1 // pred_check
      _
    $region19: #{net_forward.1} parent=1 // pred_check_branch
      %22 = sbr.rel (0) target = $region21
    $region20: #{net_forward.1} parent=1 // pred_region
      _
    $region21: #{net_forward.1} parent=1 // pred_fallthru
      _
    // Predicated region
    $region22: #{net_forward.1} parent=1 // pred_check
      _
    $region23: #{net_forward.1} parent=1 // pred_check_branch
      %24 = sbr.rel (0) target = $region25
    $region24: #{net_forward.1} parent=1 // pred_region
      _
    $region25: #{net_forward.1} parent=1 // pred_fallthru
      _
    // Predicated region
    $region26: #{net_forward.1} parent=1 // pred_check
      _
    $region27: #{net_forward.1} parent=1 // pred_check_branch
      %26 = sbr.rel (0) target = $region29
    $region28: #{net_forward.1} parent=1 // pred_region
      _
    $region29: #{net_forward.1} parent=1 // pred_fallthru
      _
    %v27 = vld [vmem:[%s1] sm:$0xff]
    %v28 = vld [vmem:[%s1 + $0x8] sm:$0xff]
    %v29 = vld [vmem:[%s1 + $0x10] sm:$0xff]
    %v30 = vld [vmem:[%s1 + $0x18] sm:$0xff]
    %v31 = vld [vmem:[%s2] sm:$0xff]
    %v32 = vld [vmem:[%s2 + $0x8] sm:$0xff]
    %v33 = vld [vmem:[%s2 + $0x10] sm:$0xff]
    %v34 = vld [vmem:[%s2 + $0x18] sm:$0xff]
    %v35 = vld [vmem:[%s3] sm:$0xff]
    %v36 = vld [vmem:[%s3 + $0x8] sm:$0xff]
    %v37 = vld [vmem:[%s3 + $0x10] sm:$0xff]
    %v38 = vld [vmem:[%s3 + $0x18] sm:$0xff]
    %s39 = scalar_lea.vmem %s3, 32
    %v40 = vld [vmem:[%s39] sm:$0xff]
    %v41 = vld [vmem:[%s39 + $0x8] sm:$0xff]
    %v42 = vld [vmem:[%s39 + $0x10] sm:$0xff]
    %v43 = vld [vmem:[%s39 + $0x18] sm:$0xff]
    %s44 = scalar_lea.vmem %s3, 64
    %v45 = vld [vmem:[%s44] sm:$0xff]
    %v46 = vld [vmem:[%s44 + $0x8] sm:$0xff]
    %v47 = vld [vmem:[%s44 + $0x10] sm:$0xff]
    %v48 = vld [vmem:[%s44 + $0x18] sm:$0xff]
    %s49 = scalar_lea.vmem %s3, 96
    %v50 = vld [vmem:[%s49] sm:$0xff]
    %v51 = vld [vmem:[%s49 + $0x8] sm:$0xff]
    %v52 = vld [vmem:[%s49 + $0x10] sm:$0xff]
    %v53 = vld [vmem:[%s49 + $0x18] sm:$0xff]
    %v54 = vld [vmem:[%s4] sm:$0xff]
    %v55 = vld [vmem:[%s4 + $0x8] sm:$0xff]
    %v56 = vld [vmem:[%s4 + $0x10] sm:$0xff]
    %v57 = vld [vmem:[%s4 + $0x18] sm:$0xff]
    %s58 = scalar_lea.vmem %s4, 32
    %v59 = vld [vmem:[%s58] sm:$0xff]
    %v60 = vld [vmem:[%s58 + $0x8] sm:$0xff]
    %v61 = vld [vmem:[%s58 + $0x10] sm:$0xff]
    %v62 = vld [vmem:[%s58 + $0x18] sm:$0xff]
    %s63 = scalar_lea.vmem %s4, 64
    %v64 = vld [vmem:[%s63] sm:$0xff]
    %v65 = vld [vmem:[%s63 + $0x8] sm:$0xff]
    %v66 = vld [vmem:[%s63 + $0x10] sm:$0xff]
    %v67 = vld [vmem:[%s63 + $0x18] sm:$0xff]
    %s68 = scalar_lea.vmem %s4, 96
    %v69 = vld [vmem:[%s68] sm:$0xff]
    %v70 = vld [vmem:[%s68 + $0x8] sm:$0xff]
    %v71 = vld [vmem:[%s68 + $0x10] sm:$0xff]
    %v72 = vld [vmem:[%s68 + $0x18] sm:$0xff]
    %v73 = vld [vmem:[%s5] sm:$0x7]
    %v74 = vld [vmem:[%s6] sm:$0x7]
    %v75 = vld [vmem:[%s0] sm:$0xf]
    %77 = vset.pattern.permute.xlu0 0
    %78 = vperm.xlu0 %77, %v27
    %v79 = vpop.permute.xlu0 %78
    %82 = vset.pattern.permute.xlu0 0
    %83 = vperm.xlu0 %82, %v28
    %v84 = vpop.permute.xlu0 %83
    %87 = vset.pattern.permute.xlu0 0
    %88 = vperm.xlu0 %87, %v29
    %v89 = vpop.permute.xlu0 %88
    %92 = vset.pattern.permute.xlu0 0
    %93 = vperm.xlu0 %92, %v30
    %v94 = vpop.permute.xlu0 %93
    %v97 = vlaneseq
    %v98 = vshrl.u32 %v97, 7
    %v99 = vsub.s32 0, %v98
    %v100 = vrot.slane %v75, %v99
    %v101 = vlaneseq
    %v102 = vshrl.u32 %v101, 7
    %v103 = vsub.s32 2, %v102
    %v104 = vrot.slane %v75, %v103
    %v107 = vlaneseq
    %v108 = vshrl.u32 %v107, 7
    %v109 = vsub.s32 0, %v108
    %v110 = vrot.slane %v100, %v109
    %v111 = vlaneseq
    %v112 = vshrl.u32 %v111, 7
    %v113 = vsub.s32 0, %v112
    %v114 = vrot.slane %v104, %v113
    %v115 = vmul.f32 %v79, %v110
    %v116 = vmul.f32 %v79, %v114
    %v117 = vmul.f32 %v84, %v110
    %v118 = vmul.f32 %v84, %v114
    %v119 = vmul.f32 %v89, %v110
    %v120 = vmul.f32 %v89, %v114
    %v121 = vmul.f32 %v94, %v110
    %v122 = vmul.f32 %v94, %v114
    %123 = vset.pattern.permute.xlu0 1
    %124 = vperm.xlu0 %123, %v27
    %v125 = vpop.permute.xlu0 %124
    %127 = vset.pattern.permute.xlu0 1
    %128 = vperm.xlu0 %127, %v28
    %v129 = vpop.permute.xlu0 %128
    %131 = vset.pattern.permute.xlu0 1
    %132 = vperm.xlu0 %131, %v29
    %v133 = vpop.permute.xlu0 %132
    %135 = vset.pattern.permute.xlu0 1
    %136 = vperm.xlu0 %135, %v30
    %v137 = vpop.permute.xlu0 %136
    %v139 = vlaneseq
    %v140 = vshrl.u32 %v139, 7
    %v141 = vsub.s32 1, %v140
    %v142 = vrot.slane %v75, %v141
    %v143 = vlaneseq
    %v144 = vshrl.u32 %v143, 7
    %v145 = vsub.s32 3, %v144
    %v146 = vrot.slane %v75, %v145
    %v149 = vlaneseq
    %v150 = vshrl.u32 %v149, 7
    %v151 = vsub.s32 1, %v150
    %v152 = vrot.slane %v142, %v151
    %v153 = vlaneseq
    %v154 = vshrl.u32 %v153, 7
    %v155 = vsub.s32 1, %v154
    %v156 = vrot.slane %v146, %v155
    %v157 = vmul.f32 %v125, %v152
    %v158 = vmul.f32 %v125, %v156
    %v159 = vmul.f32 %v129, %v152
    %v160 = vmul.f32 %v129, %v156
    %v161 = vmul.f32 %v133, %v152
    %v162 = vmul.f32 %v133, %v156
    %v163 = vmul.f32 %v137, %v152
    %v164 = vmul.f32 %v137, %v156
    %v165 = vadd.f32 %v115, %v157
    %v166 = vadd.f32 %v116, %v158
    %v167 = vadd.f32 %v117, %v159
    %v168 = vadd.f32 %v118, %v160
    %v169 = vadd.f32 %v119, %v161
    %v170 = vadd.f32 %v120, %v162
    %v171 = vadd.f32 %v121, %v163
    %v172 = vadd.f32 %v122, %v164
    %174 = vset.pattern.permute.xlu0 0
    %175 = vperm.xlu0 %174, %v31
    %v176 = vpop.permute.xlu0 %175
    %179 = vset.pattern.permute.xlu0 0
    %180 = vperm.xlu0 %179, %v32
    %v181 = vpop.permute.xlu0 %180
    %184 = vset.pattern.permute.xlu0 0
    %185 = vperm.xlu0 %184, %v33
    %v186 = vpop.permute.xlu0 %185
    %189 = vset.pattern.permute.xlu0 0
    %190 = vperm.xlu0 %189, %v34
    %v191 = vpop.permute.xlu0 %190
    %v193 = vadd.f32 %v165, %v176
    %v194 = vadd.f32 %v166, %v176
    %v195 = vadd.f32 %v167, %v181
    %v196 = vadd.f32 %v168, %v181
    %v197 = vadd.f32 %v169, %v186
    %v198 = vadd.f32 %v170, %v186
    %v199 = vadd.f32 %v171, %v191
    %v200 = vadd.f32 %v172, %v191
    %v201 = vtanh.pop %v193
    %v202 = vtanh.pop %v194
    %v203 = vtanh.pop %v195
    %v204 = vtanh.pop %v196
    %v205 = vtanh.pop %v197
    %v206 = vtanh.pop %v198
    %v207 = vtanh.pop %v199
    %v208 = vtanh.pop %v200
    %210 = vset.pattern.permute.xlu0 0
    %211 = vperm.xlu0 %210, %v54
    %v212 = vpop.permute.xlu0 %211
    %215 = vset.pattern.permute.xlu0 0
    %216 = vperm.xlu0 %215, %v55
    %v217 = vpop.permute.xlu0 %216
    %220 = vset.pattern.permute.xlu0 0
    %221 = vperm.xlu0 %220, %v56
    %v222 = vpop.permute.xlu0 %221
    %225 = vset.pattern.permute.xlu0 0
    %226 = vperm.xlu0 %225, %v57
    %v227 = vpop.permute.xlu0 %226
    %vm229 = vcmask 261120
    %v231 = vsel %vm229, %v35, 0
    %v234 = vsel %vm229, %v36, 0
    %v237 = vsel %vm229, %v37, 0
    %v240 = vsel %vm229, %v38, 0
    %242 = vmatprep.subr.mxu0 0.0
    %243 = vmatpush1.msra.mxu0 0.0
    %244 = vmatprep.subr.mxu0 0.0
    %245 = vmatpush1.msra.mxu0 0.0
    %246 = vmatprep.subr.mxu0 0.0
    %247 = vmatpush1.msra.mxu0 0.0
    %248 = vmatprep.subr.mxu0 0.0
    %249 = vmatpush1.msra.mxu0 0.0
    %250 = vmatprep.subr.mxu0 0.0
    %251 = vmatpush1.msra.mxu0 0.0
    %252 = vmatprep.subr.mxu0 0.0
    %253 = vmatpush1.msra.mxu0 0.0
    %254 = vmatprep.subr.mxu0 0.0
    %255 = vmatpush1.msra.mxu0 0.0
    %256 = vmatprep.subr.mxu0 0.0
    %257 = vmatpush1.msra.mxu0 0.0
    %258 = vmatprep.subr.mxu0 0.0
    %259 = vmatpush1.msra.mxu0 0.0
    %260 = vmatprep.subr.mxu0 0.0
    %261 = vmatpush1.msra.mxu0 0.0
    %262 = vmatprep.subr.mxu0 0.0
    %263 = vmatpush1.msra.mxu0 0.0
    %264 = vmatprep.subr.mxu0 0.0
    %265 = vmatpush1.msra.mxu0 0.0
    %266 = vmatprep.subr.mxu0 %v208
    %267 = vmatpush1.msra.mxu0 %v207
    %268 = vmatprep.subr.mxu0 %v206
    %269 = vmatpush1.msra.mxu0 %v205
    %270 = vmatprep.subr.mxu0 %v204
    %271 = vmatpush1.msra.mxu0 %v203
    %272 = vmatprep.subr.mxu0 %v202
    %273 = vmatpush1.msra.mxu0 %v201
    %274 = vmatprep.subr.mxu0 0.0
    %275 = vmatpush2.msra.mxu0 0.0
    %276 = vmatprep.subr.mxu0 0.0
    %277 = vmatpush2.msra.mxu0 0.0
    %278 = vmatprep.subr.mxu0 0.0
    %279 = vmatpush2.msra.mxu0 0.0
    %280 = vmatprep.subr.mxu0 0.0
    %281 = vmatpush2.msra.mxu0 0.0
    %282 = vmatprep.subr.mxu0 0.0
    %283 = vmatpush2.msra.mxu0 0.0
    %284 = vmatprep.subr.mxu0 0.0
    %285 = vmatpush2.msra.mxu0 0.0
    %286 = vmatprep.subr.mxu0 0.0
    %287 = vmatpush2.msra.mxu0 0.0
    %288 = vmatprep.subr.mxu0 0.0
    %289 = vmatpush2.msra.mxu0 0.0
    %290 = vmatprep.subr.mxu0 0.0
    %291 = vmatpush2.msra.mxu0 0.0
    %292 = vmatprep.subr.mxu0 0.0
    %293 = vmatpush2.msra.mxu0 0.0
    %294 = vmatprep.subr.mxu0 0.0
    %295 = vmatpush2.msra.mxu0 0.0
    %296 = vmatprep.subr.mxu0 0.0
    %297 = vmatpush2.msra.mxu0 0.0
    %298 = vmatprep.subr.mxu0 0.0
    %299 = vmatpush2.msra.mxu0 0.0
    %300 = vmatprep.subr.mxu0 0.0
    %301 = vmatpush2.msra.mxu0 0.0
    %302 = vmatprep.subr.mxu0 0.0
    %303 = vmatpush2.msra.mxu0 0.0
    %304 = vmatprep.subr.mxu0 0.0
    %305 = vmatpush2.msra.mxu0 0.0
    %306 = vmatprep.mubr.f32.mxu0 0.0
    %307 = vmatmul.mubr.f32.gmra.mxu0 %v231
    %v308 = vpop.f32.mrf.mxu0
    %v309 = vadd.f32 %v212, %v308
    %v310 = vpop.f32.mrf.mxu0
    %v311 = vadd.f32 %v212, %v310
    %312 = vmatprep.mubr.f32.mxu0 0.0
    %313 = vmatmul.mubr.f32.gmra.mxu0 %v234
    %v314 = vpop.f32.mrf.mxu0
    %v315 = vadd.f32 %v217, %v314
    %v316 = vpop.f32.mrf.mxu0
    %v317 = vadd.f32 %v217, %v316
    %318 = vmatprep.mubr.f32.mxu0 0.0
    %319 = vmatmul.mubr.f32.gmra.mxu0 %v237
    %v320 = vpop.f32.mrf.mxu0
    %v321 = vadd.f32 %v222, %v320
    %v322 = vpop.f32.mrf.mxu0
    %v323 = vadd.f32 %v222, %v322
    %324 = vmatprep.mubr.f32.mxu0 0.0
    %325 = vmatmul.mubr.f32.gmra.mxu0 %v240
    %v326 = vpop.f32.mrf.mxu0
    %v327 = vadd.f32 %v227, %v326
    %v328 = vpop.f32.mrf.mxu0
    %v329 = vadd.f32 %v227, %v328
    %330 = vdwg.mxu0
    %v331 = vtanh.pop %v309
    %v332 = vtanh.pop %v311
    %v333 = vtanh.pop %v315
    %v334 = vtanh.pop %v317
    %v335 = vtanh.pop %v321
    %v336 = vtanh.pop %v323
    %v337 = vtanh.pop %v327
    %v338 = vtanh.pop %v329
    %340 = vset.pattern.permute.xlu0 0
    %341 = vperm.xlu0 %340, %v59
    %v342 = vpop.permute.xlu0 %341
    %345 = vset.pattern.permute.xlu0 0
    %346 = vperm.xlu0 %345, %v60
    %v347 = vpop.permute.xlu0 %346
    %350 = vset.pattern.permute.xlu0 0
    %351 = vperm.xlu0 %350, %v61
    %v352 = vpop.permute.xlu0 %351
    %355 = vset.pattern.permute.xlu0 0
    %356 = vperm.xlu0 %355, %v62
    %v357 = vpop.permute.xlu0 %356
    %v360 = vsel %vm229, %v40, 0
    %v363 = vsel %vm229, %v41, 0
    %v366 = vsel %vm229, %v42, 0
    %v369 = vsel %vm229, %v43, 0
    %371 = vmatprep.subr.mxu0 0.0
    %372 = vmatpush1.msra.mxu0 0.0
    %373 = vmatprep.subr.mxu0 0.0
    %374 = vmatpush1.msra.mxu0 0.0
    %375 = vmatprep.subr.mxu0 0.0
    %376 = vmatpush1.msra.mxu0 0.0
    %377 = vmatprep.subr.mxu0 0.0
    %378 = vmatpush1.msra.mxu0 0.0
    %379 = vmatprep.subr.mxu0 0.0
    %380 = vmatpush1.msra.mxu0 0.0
    %381 = vmatprep.subr.mxu0 0.0
    %382 = vmatpush1.msra.mxu0 0.0
    %383 = vmatprep.subr.mxu0 0.0
    %384 = vmatpush1.msra.mxu0 0.0
    %385 = vmatprep.subr.mxu0 0.0
    %386 = vmatpush1.msra.mxu0 0.0
    %387 = vmatprep.subr.mxu0 0.0
    %388 = vmatpush1.msra.mxu0 0.0
    %389 = vmatprep.subr.mxu0 0.0
    %390 = vmatpush1.msra.mxu0 0.0
    %391 = vmatprep.subr.mxu0 0.0
    %392 = vmatpush1.msra.mxu0 0.0
    %393 = vmatprep.subr.mxu0 0.0
    %394 = vmatpush1.msra.mxu0 0.0
    %395 = vmatprep.subr.mxu0 %v338
    %396 = vmatpush1.msra.mxu0 %v337
    %397 = vmatprep.subr.mxu0 %v336
    %398 = vmatpush1.msra.mxu0 %v335
    %399 = vmatprep.subr.mxu0 %v334
    %400 = vmatpush1.msra.mxu0 %v333
    %401 = vmatprep.subr.mxu0 %v332
    %402 = vmatpush1.msra.mxu0 %v331
    %403 = vmatprep.subr.mxu0 0.0
    %404 = vmatpush2.msra.mxu0 0.0
    %405 = vmatprep.subr.mxu0 0.0
    %406 = vmatpush2.msra.mxu0 0.0
    %407 = vmatprep.subr.mxu0 0.0
    %408 = vmatpush2.msra.mxu0 0.0
    %409 = vmatprep.subr.mxu0 0.0
    %410 = vmatpush2.msra.mxu0 0.0
    %411 = vmatprep.subr.mxu0 0.0
    %412 = vmatpush2.msra.mxu0 0.0
    %413 = vmatprep.subr.mxu0 0.0
    %414 = vmatpush2.msra.mxu0 0.0
    %415 = vmatprep.subr.mxu0 0.0
    %416 = vmatpush2.msra.mxu0 0.0
    %417 = vmatprep.subr.mxu0 0.0
    %418 = vmatpush2.msra.mxu0 0.0
    %419 = vmatprep.subr.mxu0 0.0
    %420 = vmatpush2.msra.mxu0 0.0
    %421 = vmatprep.subr.mxu0 0.0
    %422 = vmatpush2.msra.mxu0 0.0
    %423 = vmatprep.subr.mxu0 0.0
    %424 = vmatpush2.msra.mxu0 0.0
    %425 = vmatprep.subr.mxu0 0.0
    %426 = vmatpush2.msra.mxu0 0.0
    %427 = vmatprep.subr.mxu0 0.0
    %428 = vmatpush2.msra.mxu0 0.0
    %429 = vmatprep.subr.mxu0 0.0
    %430 = vmatpush2.msra.mxu0 0.0
    %431 = vmatprep.subr.mxu0 0.0
    %432 = vmatpush2.msra.mxu0 0.0
    %433 = vmatprep.subr.mxu0 0.0
    %434 = vmatpush2.msra.mxu0 0.0
    %435 = vmatprep.mubr.f32.mxu0 0.0
    %436 = vmatmul.mubr.f32.gmra.mxu0 %v360
    %v437 = vpop.f32.mrf.mxu0
    %v438 = vadd.f32 %v342, %v437
    %v439 = vpop.f32.mrf.mxu0
    %v440 = vadd.f32 %v342, %v439
    %441 = vmatprep.mubr.f32.mxu0 0.0
    %442 = vmatmul.mubr.f32.gmra.mxu0 %v363
    %v443 = vpop.f32.mrf.mxu0
    %v444 = vadd.f32 %v347, %v443
    %v445 = vpop.f32.mrf.mxu0
    %v446 = vadd.f32 %v347, %v445
    %447 = vmatprep.mubr.f32.mxu0 0.0
    %448 = vmatmul.mubr.f32.gmra.mxu0 %v366
    %v449 = vpop.f32.mrf.mxu0
    %v450 = vadd.f32 %v352, %v449
    %v451 = vpop.f32.mrf.mxu0
    %v452 = vadd.f32 %v352, %v451
    %453 = vmatprep.mubr.f32.mxu0 0.0
    %454 = vmatmul.mubr.f32.gmra.mxu0 %v369
    %v455 = vpop.f32.mrf.mxu0
    %v456 = vadd.f32 %v357, %v455
    %v457 = vpop.f32.mrf.mxu0
    %v458 = vadd.f32 %v357, %v457
    %459 = vdwg.mxu0
    %v460 = vtanh.pop %v438
    %v461 = vtanh.pop %v440
    %v462 = vtanh.pop %v444
    %v463 = vtanh.pop %v446
    %v464 = vtanh.pop %v450
    %v465 = vtanh.pop %v452
    %v466 = vtanh.pop %v456
    %v467 = vtanh.pop %v458
    %469 = vset.pattern.permute.xlu0 0
    %470 = vperm.xlu0 %469, %v64
    %v471 = vpop.permute.xlu0 %470
    %474 = vset.pattern.permute.xlu0 0
    %475 = vperm.xlu0 %474, %v65
    %v476 = vpop.permute.xlu0 %475
    %479 = vset.pattern.permute.xlu0 0
    %480 = vperm.xlu0 %479, %v66
    %v481 = vpop.permute.xlu0 %480
    %484 = vset.pattern.permute.xlu0 0
    %485 = vperm.xlu0 %484, %v67
    %v486 = vpop.permute.xlu0 %485
    %v489 = vsel %vm229, %v45, 0
    %v492 = vsel %vm229, %v46, 0
    %v495 = vsel %vm229, %v47, 0
    %v498 = vsel %vm229, %v48, 0
    %500 = vmatprep.subr.mxu0 0.0
    %501 = vmatpush1.msra.mxu0 0.0
    %502 = vmatprep.subr.mxu0 0.0
    %503 = vmatpush1.msra.mxu0 0.0
    %504 = vmatprep.subr.mxu0 0.0
    %505 = vmatpush1.msra.mxu0 0.0
    %506 = vmatprep.subr.mxu0 0.0
    %507 = vmatpush1.msra.mxu0 0.0
    %508 = vmatprep.subr.mxu0 0.0
    %509 = vmatpush1.msra.mxu0 0.0
    %510 = vmatprep.subr.mxu0 0.0
    %511 = vmatpush1.msra.mxu0 0.0
    %512 = vmatprep.subr.mxu0 0.0
    %513 = vmatpush1.msra.mxu0 0.0
    %514 = vmatprep.subr.mxu0 0.0
    %515 = vmatpush1.msra.mxu0 0.0
    %516 = vmatprep.subr.mxu0 0.0
    %517 = vmatpush1.msra.mxu0 0.0
    %518 = vmatprep.subr.mxu0 0.0
    %519 = vmatpush1.msra.mxu0 0.0
    %520 = vmatprep.subr.mxu0 0.0
    %521 = vmatpush1.msra.mxu0 0.0
    %522 = vmatprep.subr.mxu0 0.0
    %523 = vmatpush1.msra.mxu0 0.0
    %524 = vmatprep.subr.mxu0 %v467
    %525 = vmatpush1.msra.mxu0 %v466
    %526 = vmatprep.subr.mxu0 %v465
    %527 = vmatpush1.msra.mxu0 %v464
    %528 = vmatprep.subr.mxu0 %v463
    %529 = vmatpush1.msra.mxu0 %v462
    %530 = vmatprep.subr.mxu0 %v461
    %531 = vmatpush1.msra.mxu0 %v460
    %532 = vmatprep.subr.mxu0 0.0
    %533 = vmatpush2.msra.mxu0 0.0
    %534 = vmatprep.subr.mxu0 0.0
    %535 = vmatpush2.msra.mxu0 0.0
    %536 = vmatprep.subr.mxu0 0.0
    %537 = vmatpush2.msra.mxu0 0.0
    %538 = vmatprep.subr.mxu0 0.0
    %539 = vmatpush2.msra.mxu0 0.0
    %540 = vmatprep.subr.mxu0 0.0
    %541 = vmatpush2.msra.mxu0 0.0
    %542 = vmatprep.subr.mxu0 0.0
    %543 = vmatpush2.msra.mxu0 0.0
    %544 = vmatprep.subr.mxu0 0.0
    %545 = vmatpush2.msra.mxu0 0.0
    %546 = vmatprep.subr.mxu0 0.0
    %547 = vmatpush2.msra.mxu0 0.0
    %548 = vmatprep.subr.mxu0 0.0
    %549 = vmatpush2.msra.mxu0 0.0
    %550 = vmatprep.subr.mxu0 0.0
    %551 = vmatpush2.msra.mxu0 0.0
    %552 = vmatprep.subr.mxu0 0.0
    %553 = vmatpush2.msra.mxu0 0.0
    %554 = vmatprep.subr.mxu0 0.0
    %555 = vmatpush2.msra.mxu0 0.0
    %556 = vmatprep.subr.mxu0 0.0
    %557 = vmatpush2.msra.mxu0 0.0
    %558 = vmatprep.subr.mxu0 0.0
    %559 = vmatpush2.msra.mxu0 0.0
    %560 = vmatprep.subr.mxu0 0.0
    %561 = vmatpush2.msra.mxu0 0.0
    %562 = vmatprep.subr.mxu0 0.0
    %563 = vmatpush2.msra.mxu0 0.0
    %564 = vmatprep.mubr.f32.mxu0 0.0
    %565 = vmatmul.mubr.f32.gmra.mxu0 %v489
    %v566 = vpop.f32.mrf.mxu0
    %v567 = vadd.f32 %v471, %v566
    %v568 = vpop.f32.mrf.mxu0
    %v569 = vadd.f32 %v471, %v568
    %570 = vmatprep.mubr.f32.mxu0 0.0
    %571 = vmatmul.mubr.f32.gmra.mxu0 %v492
    %v572 = vpop.f32.mrf.mxu0
    %v573 = vadd.f32 %v476, %v572
    %v574 = vpop.f32.mrf.mxu0
    %v575 = vadd.f32 %v476, %v574
    %576 = vmatprep.mubr.f32.mxu0 0.0
    %577 = vmatmul.mubr.f32.gmra.mxu0 %v495
    %v578 = vpop.f32.mrf.mxu0
    %v579 = vadd.f32 %v481, %v578
    %v580 = vpop.f32.mrf.mxu0
    %v581 = vadd.f32 %v481, %v580
    %582 = vmatprep.mubr.f32.mxu0 0.0
    %583 = vmatmul.mubr.f32.gmra.mxu0 %v498
    %v584 = vpop.f32.mrf.mxu0
    %v585 = vadd.f32 %v486, %v584
    %v586 = vpop.f32.mrf.mxu0
    %v587 = vadd.f32 %v486, %v586
    %588 = vdwg.mxu0
    %v589 = vtanh.pop %v567
    %v590 = vtanh.pop %v569
    %v591 = vtanh.pop %v573
    %v592 = vtanh.pop %v575
    %v593 = vtanh.pop %v579
    %v594 = vtanh.pop %v581
    %v595 = vtanh.pop %v585
    %v596 = vtanh.pop %v587
    %598 = vset.pattern.permute.xlu0 0
    %599 = vperm.xlu0 %598, %v69
    %v600 = vpop.permute.xlu0 %599
    %603 = vset.pattern.permute.xlu0 0
    %604 = vperm.xlu0 %603, %v70
    %v605 = vpop.permute.xlu0 %604
    %608 = vset.pattern.permute.xlu0 0
    %609 = vperm.xlu0 %608, %v71
    %v610 = vpop.permute.xlu0 %609
    %613 = vset.pattern.permute.xlu0 0
    %614 = vperm.xlu0 %613, %v72
    %v615 = vpop.permute.xlu0 %614
    %v618 = vsel %vm229, %v50, 0
    %v621 = vsel %vm229, %v51, 0
    %v624 = vsel %vm229, %v52, 0
    %v627 = vsel %vm229, %v53, 0
    %629 = vmatprep.subr.mxu0 0.0
    %630 = vmatpush1.msra.mxu0 0.0
    %631 = vmatprep.subr.mxu0 0.0
    %632 = vmatpush1.msra.mxu0 0.0
    %633 = vmatprep.subr.mxu0 0.0
    %634 = vmatpush1.msra.mxu0 0.0
    %635 = vmatprep.subr.mxu0 0.0
    %636 = vmatpush1.msra.mxu0 0.0
    %637 = vmatprep.subr.mxu0 0.0
    %638 = vmatpush1.msra.mxu0 0.0
    %639 = vmatprep.subr.mxu0 0.0
    %640 = vmatpush1.msra.mxu0 0.0
    %641 = vmatprep.subr.mxu0 0.0
    %642 = vmatpush1.msra.mxu0 0.0
    %643 = vmatprep.subr.mxu0 0.0
    %644 = vmatpush1.msra.mxu0 0.0
    %645 = vmatprep.subr.mxu0 0.0
    %646 = vmatpush1.msra.mxu0 0.0
    %647 = vmatprep.subr.mxu0 0.0
    %648 = vmatpush1.msra.mxu0 0.0
    %649 = vmatprep.subr.mxu0 0.0
    %650 = vmatpush1.msra.mxu0 0.0
    %651 = vmatprep.subr.mxu0 0.0
    %652 = vmatpush1.msra.mxu0 0.0
    %653 = vmatprep.subr.mxu0 %v596
    %654 = vmatpush1.msra.mxu0 %v595
    %655 = vmatprep.subr.mxu0 %v594
    %656 = vmatpush1.msra.mxu0 %v593
    %657 = vmatprep.subr.mxu0 %v592
    %658 = vmatpush1.msra.mxu0 %v591
    %659 = vmatprep.subr.mxu0 %v590
    %660 = vmatpush1.msra.mxu0 %v589
    %661 = vmatprep.subr.mxu0 0.0
    %662 = vmatpush2.msra.mxu0 0.0
    %663 = vmatprep.subr.mxu0 0.0
    %664 = vmatpush2.msra.mxu0 0.0
    %665 = vmatprep.subr.mxu0 0.0
    %666 = vmatpush2.msra.mxu0 0.0
    %667 = vmatprep.subr.mxu0 0.0
    %668 = vmatpush2.msra.mxu0 0.0
    %669 = vmatprep.subr.mxu0 0.0
    %670 = vmatpush2.msra.mxu0 0.0
    %671 = vmatprep.subr.mxu0 0.0
    %672 = vmatpush2.msra.mxu0 0.0
    %673 = vmatprep.subr.mxu0 0.0
    %674 = vmatpush2.msra.mxu0 0.0
    %675 = vmatprep.subr.mxu0 0.0
    %676 = vmatpush2.msra.mxu0 0.0
    %677 = vmatprep.subr.mxu0 0.0
    %678 = vmatpush2.msra.mxu0 0.0
    %679 = vmatprep.subr.mxu0 0.0
    %680 = vmatpush2.msra.mxu0 0.0
    %681 = vmatprep.subr.mxu0 0.0
    %682 = vmatpush2.msra.mxu0 0.0
    %683 = vmatprep.subr.mxu0 0.0
    %684 = vmatpush2.msra.mxu0 0.0
    %685 = vmatprep.subr.mxu0 0.0
    %686 = vmatpush2.msra.mxu0 0.0
    %687 = vmatprep.subr.mxu0 0.0
    %688 = vmatpush2.msra.mxu0 0.0
    %689 = vmatprep.subr.mxu0 0.0
    %690 = vmatpush2.msra.mxu0 0.0
    %691 = vmatprep.subr.mxu0 0.0
    %692 = vmatpush2.msra.mxu0 0.0
    %693 = vmatprep.mubr.f32.mxu0 0.0
    %694 = vmatmul.mubr.f32.gmra.mxu0 %v618
    %v695 = vpop.f32.mrf.mxu0
    %v696 = vadd.f32 %v600, %v695
    %v697 = vpop.f32.mrf.mxu0
    %v698 = vadd.f32 %v600, %v697
    %699 = vmatprep.mubr.f32.mxu0 0.0
    %700 = vmatmul.mubr.f32.gmra.mxu0 %v621
    %v701 = vpop.f32.mrf.mxu0
    %v702 = vadd.f32 %v605, %v701
    %v703 = vpop.f32.mrf.mxu0
    %v704 = vadd.f32 %v605, %v703
    %705 = vmatprep.mubr.f32.mxu0 0.0
    %706 = vmatmul.mubr.f32.gmra.mxu0 %v624
    %v707 = vpop.f32.mrf.mxu0
    %v708 = vadd.f32 %v610, %v707
    %v709 = vpop.f32.mrf.mxu0
    %v710 = vadd.f32 %v610, %v709
    %711 = vmatprep.mubr.f32.mxu0 0.0
    %712 = vmatmul.mubr.f32.gmra.mxu0 %v627
    %v713 = vpop.f32.mrf.mxu0
    %v714 = vadd.f32 %v615, %v713
    %v715 = vpop.f32.mrf.mxu0
    %v716 = vadd.f32 %v615, %v715
    %717 = vdwg.mxu0
    %v718 = vtanh.pop %v696
    %v719 = vtanh.pop %v698
    %v720 = vtanh.pop %v702
    %v721 = vtanh.pop %v704
    %v722 = vtanh.pop %v708
    %v723 = vtanh.pop %v710
    %v724 = vtanh.pop %v714
    %v725 = vtanh.pop %v716
    %727 = vset.pattern.permute.xlu0 0
    %728 = vperm.xlu0 %727, %v74
    %v729 = vpop.permute.xlu0 %728
    %v732 = vsel %vm229, %v73, 0
    %734 = vmatprep.subr.mxu0 0.0
    %735 = vmatpush1.msra.mxu0 0.0
    %736 = vmatprep.subr.mxu0 0.0
    %737 = vmatpush1.msra.mxu0 0.0
    %738 = vmatprep.subr.mxu0 0.0
    %739 = vmatpush1.msra.mxu0 0.0
    %740 = vmatprep.subr.mxu0 0.0
    %741 = vmatpush1.msra.mxu0 0.0
    %742 = vmatprep.subr.mxu0 0.0
    %743 = vmatpush1.msra.mxu0 0.0
    %744 = vmatprep.subr.mxu0 0.0
    %745 = vmatpush1.msra.mxu0 0.0
    %746 = vmatprep.subr.mxu0 0.0
    %747 = vmatpush1.msra.mxu0 0.0
    %748 = vmatprep.subr.mxu0 0.0
    %749 = vmatpush1.msra.mxu0 0.0
    %750 = vmatprep.subr.mxu0 0.0
    %751 = vmatpush1.msra.mxu0 0.0
    %752 = vmatprep.subr.mxu0 0.0
    %753 = vmatpush1.msra.mxu0 0.0
    %754 = vmatprep.subr.mxu0 0.0
    %755 = vmatpush1.msra.mxu0 0.0
    %756 = vmatprep.subr.mxu0 0.0
    %757 = vmatpush1.msra.mxu0 0.0
    %758 = vmatprep.subr.mxu0 %v725
    %759 = vmatpush1.msra.mxu0 %v724
    %760 = vmatprep.subr.mxu0 %v723
    %761 = vmatpush1.msra.mxu0 %v722
    %762 = vmatprep.subr.mxu0 %v721
    %763 = vmatpush1.msra.mxu0 %v720
    %764 = vmatprep.subr.mxu0 %v719
    %765 = vmatpush1.msra.mxu0 %v718
    %766 = vmatprep.subr.mxu0 0.0
    %767 = vmatpush2.msra.mxu0 0.0
    %768 = vmatprep.subr.mxu0 0.0
    %769 = vmatpush2.msra.mxu0 0.0
    %770 = vmatprep.subr.mxu0 0.0
    %771 = vmatpush2.msra.mxu0 0.0
    %772 = vmatprep.subr.mxu0 0.0
    %773 = vmatpush2.msra.mxu0 0.0
    %774 = vmatprep.subr.mxu0 0.0
    %775 = vmatpush2.msra.mxu0 0.0
    %776 = vmatprep.subr.mxu0 0.0
    %777 = vmatpush2.msra.mxu0 0.0
    %778 = vmatprep.subr.mxu0 0.0
    %779 = vmatpush2.msra.mxu0 0.0
    %780 = vmatprep.subr.mxu0 0.0
    %781 = vmatpush2.msra.mxu0 0.0
    %782 = vmatprep.subr.mxu0 0.0
    %783 = vmatpush2.msra.mxu0 0.0
    %784 = vmatprep.subr.mxu0 0.0
    %785 = vmatpush2.msra.mxu0 0.0
    %786 = vmatprep.subr.mxu0 0.0
    %787 = vmatpush2.msra.mxu0 0.0
    %788 = vmatprep.subr.mxu0 0.0
    %789 = vmatpush2.msra.mxu0 0.0
    %790 = vmatprep.subr.mxu0 0.0
    %791 = vmatpush2.msra.mxu0 0.0
    %792 = vmatprep.subr.mxu0 0.0
    %793 = vmatpush2.msra.mxu0 0.0
    %794 = vmatprep.subr.mxu0 0.0
    %795 = vmatpush2.msra.mxu0 0.0
    %796 = vmatprep.subr.mxu0 0.0
    %797 = vmatpush2.msra.mxu0 0.0
    %798 = vmatprep.mubr.f32.mxu0 0.0
    %799 = vmatmul.mubr.f32.gmra.mxu0 %v732
    %v800 = vpop.f32.mrf.mxu0
    %v801 = vadd.f32 %v729, %v800
    %v802 = vpop.f32.mrf.mxu0
    %v803 = vadd.f32 %v729, %v802
    %804 = vdwg.mxu0
    %v807 = vcombine.low %v801, %v803
    %809 = vst [vmem:[#allocation2] sm:$0x77] %v807
    // Predicated region
    $region30: #{net_forward.1} parent=1 // pred_check
      _
    $region31: #{net_forward.1} parent=1 // pred_check_branch
      %811 = sbr.rel (0) target = $region33
    $region32: #{net_forward.1} parent=1 // pred_region
      %s813 = ssub.s32 128, 128
      %814 = vsyncadd [#allocation3], %s813
      %s816 = sshll.u32 [#allocation2], 4
      %s817 = int_to_ptr.vmem [resolvable:$true] %s816
      %819 = dma.vmem_to_hbm [thread:$0]  %s817, 128, %s7, [#allocation3]
    $region33: #{net_forward.1} parent=1 // pred_fallthru
      _
    // Predicated region
    $region34: #{net_forward.1} parent=1 // pred_check
      _
    $region35: #{net_forward.1} parent=1 // pred_check_branch
      %821 = sbr.rel (0) target = $region37
    $region36: #{net_forward.1} parent=1 // pred_region
      %822 = dma.done [#allocation3], 128
    $region37: #{net_forward.1} parent=1 // pred_fallthru
      _
    %823 = vsyncpa [#allocation3], 1

</llo_original>
